<compile_context>
chip_gen: v7x
topology: tpu7x:2x2x1
jax: 0.10.0
libtpu: 0.0.40
codegen_flags: <defaults>
</compile_context>

<pallas_src>
import functools

import jax
import jax.numpy as jnp
from jax.experimental import pallas as pl
from jax.experimental.pallas import tpu as pltpu

IGNORE_ID = -1


def _focal_loss_kernel(logits_ref, tgt_ref, alpha_ref, out_ref, acc_ref, *,
                       gamma, size_average):
    i = pl.program_id(0)

    @pl.when(i == 0)
    def _init():
        acc_ref[0] = jnp.float32(0.0)   # running sum of masked losses
        acc_ref[1] = jnp.float32(0.0)   # running count of valid rows

    x = logits_ref[...].astype(jnp.float32)      # (TILE_N, C) upcast in-kernel
    t = tgt_ref[...]                             # (TILE_N, 1) int32
    a = alpha_ref[...].astype(jnp.float32)       # (1, C)

    valid = t != IGNORE_ID                       # (TILE_N, 1) bool
    t_safe = jnp.where(valid, t, 0)              # ignored rows -> class 0

    # One-hot replaces the torch scatter_/gather.
    col = jax.lax.broadcasted_iota(jnp.int32, x.shape, 1)    # (TILE_N, C)
    onehot = (col == t_safe).astype(jnp.float32)             # (TILE_N, C)

    # Log-softmax: log_p = x_t - m - logsumexp(x - m); probs = exp(log_p).
    m = jnp.max(x, axis=1, keepdims=True)                    # (TILE_N, 1)
    lse = jnp.log(jnp.sum(jnp.exp(x - m), axis=1, keepdims=True))
    x_t = jnp.sum(x * onehot, axis=1, keepdims=True)         # logit of target
    log_p = x_t - m - lse                                    # (TILE_N, 1)
    probs = jnp.exp(log_p)

    alpha_g = jnp.sum(a * onehot, axis=1, keepdims=True)     # alpha[t_i]

    one_minus_p = jnp.maximum(1.0 - probs, 0.0)
    g = float(gamma)
    gi = int(g)
    if g == gi and 0 <= gi <= 8:
        # Integer gamma: cheap VPU multiplies, no EUP pow, no NaN hazard.
        if gi == 0:
            w = jnp.ones_like(one_minus_p)
        else:
            w = one_minus_p
            for _ in range(gi - 1):
                w = w * one_minus_p
    else:
        w = jnp.power(one_minus_p, g)

    batch_loss = -alpha_g * w * log_p            # (TILE_N, 1)
    validf = valid.astype(jnp.float32)

    acc_ref[0] = acc_ref[0] + jnp.sum(batch_loss * validf)
    acc_ref[1] = acc_ref[1] + jnp.sum(validf)

    @pl.when(i == pl.num_programs(0) - 1)
    def _finalize():
        total = acc_ref[0]
        count = acc_ref[1]
        if size_average:
            out_ref[0, 0] = total / jnp.maximum(count, jnp.float32(1.0))
        else:
            out_ref[0, 0] = total


def focal_loss(logits, targets, alpha, *, gamma=2.0, size_average=True,
               tile_n=None):
    """logits: (N, C) float (any dtype); targets: (N,) or (N,1) int
    (IGNORE_ID = -1); alpha: (C,) or (C,1) float. Returns scalar loss."""
    N, C = logits.shape
    tgt = targets.reshape(N).astype(jnp.int32)
    alpha_2d = jnp.asarray(alpha, jnp.float32).reshape(1, C)

    def round_up(a, b):
        return -(-a // b) * b

    itemsize = jnp.dtype(logits.dtype).itemsize
    if tile_n is None:
        # Keep (2 inputs x 2 buffers x TILE_N x C) comfortably under the
        # scoped-VMEM budget on every generation (64 MiB physical on v7x).
        vmem_budget = 8 * 1024 * 1024
        max_rows = max(8, (vmem_budget // (2 * C * itemsize)) // 8 * 8)
        tile_n = int(min(512, max_rows))
    tile_n = max(8, round_up(int(tile_n), 8))
    if round_up(N, 8) <= tile_n:
        tile_n = round_up(N, 8)

    padded_n = round_up(N, tile_n)
    pad = padded_n - N
    if pad:
        # Padded rows get IGNORE_ID targets -> masked out inside the kernel.
        logits = jnp.pad(logits, ((0, pad), (0, 0)))
        tgt = jnp.pad(tgt, (0, pad), constant_values=IGNORE_ID)
    tgt_2d = tgt.reshape(padded_n, 1)

    grid = (padded_n // tile_n,)
    kernel = functools.partial(
        _focal_loss_kernel, gamma=float(gamma), size_average=bool(size_average)
    )

    out = pl.pallas_call(
        kernel,
        out_shape=jax.ShapeDtypeStruct((1, 1), jnp.float32),
        grid_spec=pltpu.PrefetchScalarGridSpec(
            num_scalar_prefetch=0,
            grid=grid,
            in_specs=[
                pl.BlockSpec((tile_n, C), lambda i: (i, 0)),   # logits tile
                pl.BlockSpec((tile_n, 1), lambda i: (i, 0)),   # targets tile
                pl.BlockSpec((1, C), lambda i: (0, 0)),        # alpha (resident)
            ],
            out_specs=pl.BlockSpec((1, 1), lambda i: (0, 0),
                                   memory_space=pltpu.MemorySpace.SMEM),
            scratch_shapes=[pltpu.SMEM((2,), jnp.float32)],
        ),
        compiler_params=pltpu.CompilerParams(
            dimension_semantics=("arbitrary",),      # reduction axis
            vmem_limit_bytes=32 * 1024 * 1024,
        ),
    )(logits, tgt_2d, alpha_2d)
    return out[0, 0]


def _focal_loss_ref(logits, targets, alpha, *, gamma=2.0, size_average=True):
    """Pure-JAX reference for sanity checks."""
    N, C = logits.shape
    p = jax.nn.softmax(logits.astype(jnp.float32), axis=1)
    valid = targets.reshape(N) != IGNORE_ID
    t_safe = jnp.where(valid, targets.reshape(N), 0)
    probs = p[jnp.arange(N), t_safe]
    a = jnp.asarray(alpha, jnp.float32).reshape(-1)[t_safe]
    loss = -a * (1.0 - probs) ** gamma * jnp.log(probs)
    loss = loss * valid.astype(jnp.float32)
    if size_average:
        return jnp.sum(loss) / jnp.sum(valid.astype(jnp.float32))
    return jnp.sum(loss)


if __name__ == "__main__":
    key = jax.random.PRNGKey(0)
    C = 16
    alpha = jnp.ones((C, 1), dtype=jnp.float32)   # module default alpha
    k1, k2, k3, k4 = jax.random.split(key, 4)

    # Case 1: small batch, single tile, mean reduction.
    N = 8
    logits = jax.random.normal(k1, (N, C), dtype=jnp.float32)
    targets = jax.random.randint(k2, (N,), 0, C, dtype=jnp.int32)
    targets = targets.at[3].set(IGNORE_ID).at[6].set(IGNORE_ID)

    loss = jax.block_until_ready(
        focal_loss(logits, targets, alpha, gamma=2.0, size_average=True))
    ref = _focal_loss_ref(logits, targets, alpha, gamma=2.0, size_average=True)
    assert jnp.allclose(loss, ref, rtol=1e-5, atol=1e-6), (loss, ref)

    # Case 2: multi-tile grid (forced tile_n=8, N=20 -> 3 tiles with padded
    # tail) + sum reduction, exercising the accumulator/finalize path.
    N2 = 20
    logits2 = jax.random.normal(k3, (N2, C), dtype=jnp.float32)
    targets2 = jax.random.randint(k4, (N2,), 0, C, dtype=jnp.int32)
    targets2 = targets2.at[0].set(IGNORE_ID).at[11].set(IGNORE_ID)

    loss2 = jax.block_until_ready(
        focal_loss(logits2, targets2, alpha, gamma=2.0, size_average=False,
                   tile_n=8))
    ref2 = _focal_loss_ref(logits2, targets2, alpha, gamma=2.0,
                           size_average=False)
    assert jnp.allclose(loss2, ref2, rtol=1e-5, atol=1e-5), (loss2, ref2)

    # Case 3: bf16 logits stay bf16 through the call (HBM-bandwidth win);
    # reference uses the same rounded inputs, compute is f32 in both.
    logits_bf16 = logits2.astype(jnp.bfloat16)
    loss3 = jax.block_until_ready(
        focal_loss(logits_bf16, targets2, alpha, gamma=2.0, size_average=True))
    ref3 = _focal_loss_ref(logits_bf16.astype(jnp.float32), targets2, alpha,
                           gamma=2.0, size_average=True)
    assert jnp.allclose(loss3, ref3, rtol=1e-4, atol=1e-5), (loss3, ref3)

    print("KERNEL_OK")
</pallas_src>

<mosaic_0001>
module attributes {stable_mosaic.version = 11 : i64} {
  func.func @_focal_loss_kernel(%arg0: i32, %arg1: memref<8x16xf32, #tpu.memory_space<vmem>>, %arg2: memref<8x1xi32, #tpu.memory_space<vmem>>, %arg3: memref<1x16xf32, #tpu.memory_space<vmem>>, %arg4: memref<1x1xf32, #tpu.memory_space<smem>>, %arg5: memref<2xf32, #tpu.memory_space<smem>>) attributes {dimension_semantics = [#tpu.dimension_semantics<arbitrary>], iteration_bounds = array<i64: 1>, scalar_prefetch = 0 : i64, scratch_operands = 1 : i64, tpu.core_type = #tpu.core_type<tc>, window_params = [{transform_indices = @transform_0, window_bounds = array<i64: 8, 16>}, {transform_indices = @transform_1, window_bounds = array<i64: 8, 1>}, {pipeline_mode = #tpu.pipeline_mode<synchronous>, transform_indices = @transform_2, window_bounds = array<i64: 1, 16>}, {transform_indices = @transform_3, window_bounds = array<i64: 1, 1>}]} {
    %c0_i32 = arith.constant 0 : i32
    %0 = arith.cmpi eq, %arg0, %c0_i32 : i32
    %1 = arith.extui %0 : i1 to i32
    %c0_i32_0 = arith.constant 0 : i32
    %2 = arith.cmpi ne, %1, %c0_i32_0 : i32
    scf.if %2 {
      %cst_20 = arith.constant 0.000000e+00 : f32
      %c0_21 = arith.constant 0 : index
      %62 = memref.load %arg5[%c0_21] : memref<2xf32, #tpu.memory_space<smem>>
      memref.store %cst_20, %arg5[%c0_21] : memref<2xf32, #tpu.memory_space<smem>>
      %cst_22 = arith.constant 0.000000e+00 : f32
      %c1_23 = arith.constant 1 : index
      %63 = memref.load %arg5[%c1_23] : memref<2xf32, #tpu.memory_space<smem>>
      memref.store %cst_22, %arg5[%c1_23] : memref<2xf32, #tpu.memory_space<smem>>
    } else {
    }
    %c0 = arith.constant 0 : index
    %c0_1 = arith.constant 0 : index
    %3 = vector.load %arg1[%c0, %c0_1] : memref<8x16xf32, #tpu.memory_space<vmem>>, vector<8x16xf32>
    %c0_2 = arith.constant 0 : index
    %c0_3 = arith.constant 0 : index
    %4 = vector.load %arg2[%c0_2, %c0_3] : memref<8x1xi32, #tpu.memory_space<vmem>>, vector<8x1xi32>
    %c0_4 = arith.constant 0 : index
    %c0_5 = arith.constant 0 : index
    %5 = vector.load %arg3[%c0_4, %c0_5] : memref<1x16xf32, #tpu.memory_space<vmem>>, vector<1x16xf32>
    %c-1_i32 = arith.constant -1 : i32
    %6 = vector.broadcast %c-1_i32 : i32 to vector<8x1xi32>
    %7 = arith.cmpi ne, %4, %6 : vector<8x1xi32>
    %c0_i32_6 = arith.constant 0 : i32
    %8 = vector.broadcast %c0_i32_6 : i32 to vector<8x1xi32>
    %9 = arith.select %7, %4, %8 : vector<8x1xi1>, vector<8x1xi32>
    %10 = tpu.iota {dimensions = array<i32: 1>} : vector<8x16xi32>
    %11 = vector.broadcast %9 : vector<8x1xi32> to vector<8x16xi32>
    %12 = arith.cmpi eq, %10, %11 : vector<8x16xi32>
    %13 = arith.extui %12 : vector<8x16xi1> to vector<8x16xi32>
    %14 = arith.sitofp %13 : vector<8x16xi32> to vector<8x16xf32>
    %cst = arith.constant dense<0xFF800000> : vector<8xf32>
    %15 = vector.multi_reduction <maximumf>, %3, %cst [1] : vector<8x16xf32> to vector<8xf32>
    %16 = vector.shape_cast %15 : vector<8xf32> to vector<8x1xf32>
    %17 = vector.broadcast %16 : vector<8x1xf32> to vector<8x16xf32>
    %18 = arith.subf %3, %17 : vector<8x16xf32>
    %19 = math.exp %18 : vector<8x16xf32>
    %cst_7 = arith.constant dense<0.000000e+00> : vector<8xf32>
    %20 = vector.multi_reduction <add>, %19, %cst_7 [1] : vector<8x16xf32> to vector<8xf32>
    %21 = vector.shape_cast %20 : vector<8xf32> to vector<8x1xf32>
    %22 = math.log %21 : vector<8x1xf32>
    %23 = arith.mulf %3, %14 : vector<8x16xf32>
    %cst_8 = arith.constant dense<0.000000e+00> : vector<8xf32>
    %24 = vector.multi_reduction <add>, %23, %cst_8 [1] : vector<8x16xf32> to vector<8xf32>
    %25 = vector.shape_cast %24 : vector<8xf32> to vector<8x1xf32>
    %26 = arith.subf %25, %16 : vector<8x1xf32>
    %27 = arith.subf %26, %22 : vector<8x1xf32>
    %28 = math.exp %27 : vector<8x1xf32>
    %29 = vector.broadcast %5 : vector<1x16xf32> to vector<8x16xf32>
    %30 = arith.mulf %29, %14 : vector<8x16xf32>
    %cst_9 = arith.constant dense<0.000000e+00> : vector<8xf32>
    %31 = vector.multi_reduction <add>, %30, %cst_9 [1] : vector<8x16xf32> to vector<8xf32>
    %32 = vector.shape_cast %31 : vector<8xf32> to vector<8x1xf32>
    %cst_10 = arith.constant 1.000000e+00 : f32
    %33 = vector.broadcast %cst_10 : f32 to vector<8x1xf32>
    %34 = arith.subf %33, %28 : vector<8x1xf32>
    %cst_11 = arith.constant 0.000000e+00 : f32
    %35 = vector.broadcast %cst_11 : f32 to vector<8x1xf32>
    %36 = arith.maximumf %34, %35 : vector<8x1xf32>
    %37 = arith.mulf %36, %36 : vector<8x1xf32>
    %cst_12 = arith.constant 0.000000e+00 : f32
    %38 = vector.broadcast %cst_12 : f32 to vector<8x1xf32>
    %39 = arith.subf %38, %32 : vector<8x1xf32>
    %40 = arith.mulf %39, %37 : vector<8x1xf32>
    %41 = arith.mulf %40, %27 : vector<8x1xf32>
    %42 = arith.extui %7 : vector<8x1xi1> to vector<8x1xi32>
    %43 = arith.sitofp %42 : vector<8x1xi32> to vector<8x1xf32>
    %c0_13 = arith.constant 0 : index
    %44 = memref.load %arg5[%c0_13] : memref<2xf32, #tpu.memory_space<smem>>
    %45 = arith.mulf %41, %43 : vector<8x1xf32>
    %46 = vector.shape_cast %45 : vector<8x1xf32> to vector<1x8x1xf32>
    %cst_14 = arith.constant dense<0.000000e+00> : vector<1xf32>
    %47 = vector.multi_reduction <add>, %46, %cst_14 [1, 2] : vector<1x8x1xf32> to vector<1xf32>
    %48 = vector.shape_cast %47 : vector<1xf32> to vector<1x1x1xf32>
    %49 = vector.extract %48[0, 0, 0] : f32 from vector<1x1x1xf32>
    %50 = arith.addf %44, %49 : f32
    %c0_15 = arith.constant 0 : index
    %51 = memref.load %arg5[%c0_15] : memref<2xf32, #tpu.memory_space<smem>>
    memref.store %50, %arg5[%c0_15] : memref<2xf32, #tpu.memory_space<smem>>
    %c1 = arith.constant 1 : index
    %52 = memref.load %arg5[%c1] : memref<2xf32, #tpu.memory_space<smem>>
    %53 = vector.shape_cast %43 : vector<8x1xf32> to vector<1x8x1xf32>
    %cst_16 = arith.constant dense<0.000000e+00> : vector<1xf32>
    %54 = vector.multi_reduction <add>, %53, %cst_16 [1, 2] : vector<1x8x1xf32> to vector<1xf32>
    %55 = vector.shape_cast %54 : vector<1xf32> to vector<1x1x1xf32>
    %56 = vector.extract %55[0, 0, 0] : f32 from vector<1x1x1xf32>
    %57 = arith.addf %52, %56 : f32
    %c1_17 = arith.constant 1 : index
    %58 = memref.load %arg5[%c1_17] : memref<2xf32, #tpu.memory_space<smem>>
    memref.store %57, %arg5[%c1_17] : memref<2xf32, #tpu.memory_space<smem>>
    %c0_i32_18 = arith.constant 0 : i32
    %59 = arith.cmpi eq, %arg0, %c0_i32_18 : i32
    %60 = arith.extui %59 : i1 to i32
    %c0_i32_19 = arith.constant 0 : i32
    %61 = arith.cmpi ne, %60, %c0_i32_19 : i32
    scf.if %61 {
      %c0_20 = arith.constant 0 : index
      %62 = memref.load %arg5[%c0_20] : memref<2xf32, #tpu.memory_space<smem>>
      %c1_21 = arith.constant 1 : index
      %63 = memref.load %arg5[%c1_21] : memref<2xf32, #tpu.memory_space<smem>>
      %cst_22 = arith.constant 1.000000e+00 : f32
      %64 = arith.maximumf %63, %cst_22 : f32
      %65 = arith.divf %62, %64 : f32
      %c0_23 = arith.constant 0 : index
      %c0_24 = arith.constant 0 : index
      %66 = memref.load %arg4[%c0_23, %c0_24] : memref<1x1xf32, #tpu.memory_space<smem>>
      memref.store %65, %arg4[%c0_23, %c0_24] : memref<1x1xf32, #tpu.memory_space<smem>>
    } else {
    }
    return
  }
  func.func @transform_0(%arg0: i32) -> (i32, i32) {
    %c0_i32 = arith.constant 0 : i32
    %c0_i32_0 = arith.constant 0 : i32
    return %arg0, %c0_i32 : i32, i32
  }
  func.func @transform_1(%arg0: i32) -> (i32, i32) {
    %c0_i32 = arith.constant 0 : i32
    %c0_i32_0 = arith.constant 0 : i32
    return %arg0, %c0_i32 : i32, i32
  }
  func.func @transform_2(%arg0: i32) -> (i32, i32) {
    %c0_i32 = arith.constant 0 : i32
    %c0_i32_0 = arith.constant 0 : i32
    %c0_i32_1 = arith.constant 0 : i32
    return %c0_i32, %c0_i32_0 : i32, i32
  }
  func.func @transform_3(%arg0: i32) -> (i32, i32) {
    %c0_i32 = arith.constant 0 : i32
    %c0_i32_0 = arith.constant 0 : i32
    %c0_i32_1 = arith.constant 0 : i32
    return %c0_i32, %c0_i32_0 : i32, i32
  }
}

</mosaic_0001>

<llo_original>
// kernel: tpu_custom_call.1
$region0: #{tpu_custom_call.1}
  #allocation0 [shape = 'u32[]', space=smem, size = 0x4, offset = 0x4, fixed_abs, tag = 'smem constant byte address 0x4 - core index']
  #allocation1 [shape = 'u32[144,128]{1,0:T(1,128)}', space=vmem, size = 0x12000, scoped, tag = 'internal scratch']
  #allocation2 [shape = 'f32[2]{0:T(128)}', space=smem, size = 0x200, scoped, tag = 'scratch operand']
  %s0 = inlined_call_operand.vmem [shape: f32[8,16], index: 0, kind: input, shape index: {}]
  %s1 = inlined_call_operand.vmem [shape: s32[8,1], index: 1, kind: input, shape index: {}]
  %s2 = inlined_call_operand.vmem [shape: f32[1,16], index: 2, kind: input, shape index: {}]
  %s3 = inlined_call_operand.hbm [shape: f32[1,1], index: 3, kind: output, shape index: {}]
  %s4 = sld [smem:[#allocation0]]
  $region30: #{tpu_custom_call.1} parent=0
    _
  %s6 = ssub.s32 1, %s4
  %s7 = scalar_select 0, %s6, %s4
  $region1: #{tpu_custom_call.1} parent=0
    #allocation3 [shape = 'u8[512]{0}', space=smem, size = 0x200, scoped, tag = 'output window, operand 0, single buffered']
    #allocation4 [shape = 's32[1]{0}', space=sflag, size = 0x4, scoped, tag = 'scoped memory for tpu_custom_call.1']
    %8 = vsyncpa [#allocation4], 0
    // Predicated region
    $region2: #{tpu_custom_call.1} parent=1 // pred_check
      _
    $region3: #{tpu_custom_call.1} parent=1 // pred_check_branch
      %10 = sbr.rel (0) target = $region5
    $region4: #{tpu_custom_call.1} parent=1 // pred_region
      _
    $region5: #{tpu_custom_call.1} parent=1 // pred_fallthru
      _
    // Predicated region
    $region6: #{tpu_custom_call.1} parent=1 // pred_check
      _
    $region7: #{tpu_custom_call.1} parent=1 // pred_check_branch
      %12 = sbr.rel (0) target = $region9
    $region8: #{tpu_custom_call.1} parent=1 // pred_region
      _
    $region9: #{tpu_custom_call.1} parent=1 // pred_fallthru
      _
    // Predicated region
    $region10: #{tpu_custom_call.1} parent=1 // pred_check
      _
    $region11: #{tpu_custom_call.1} parent=1 // pred_check_branch
      %14 = sbr.rel (0) target = $region13
    $region12: #{tpu_custom_call.1} parent=1 // pred_region
      _
    $region13: #{tpu_custom_call.1} parent=1 // pred_fallthru
      _
    %p15 = scmp.eq.s32.totalorder 0, 0
    // Predicated region
    $region14: #{tpu_custom_call.1} parent=1 // pred_check
      %p16 = pneg %p15
    $region15: #{tpu_custom_call.1} parent=1 // pred_check_branch
      %18 = sbr.rel (%p16) target = $region17
    $region16: #{tpu_custom_call.1} parent=1 // pred_region
      %s19 = scalar_lea.smem [#allocation2], 0
      %20 = sst [smem:[%s19]] 0.0
      %s21 = scalar_lea.smem [#allocation2], 1
      %22 = sst [smem:[%s21]] 0.0
    $region17: #{tpu_custom_call.1} parent=1 // pred_fallthru
      _
    %v23 = vld [vmem:[%s0] sm:$0xff]
    %v24 = vld [vmem:[%s1] sm:$0xff]
    %v25 = vld [vmem:[%s2] sm:$0x1]
    %vm26 = vcmp.ne.s32.totalorder %v24, 4294967295
    %v27 = vsel %vm26, %v24, 0
    %v28 = vlaneseq
    %v29 = vand.u32 %v28, 127
    %30 = vset.pattern.permute.xlu0 0
    %31 = vperm.xlu0 %30, %v27
    %v32 = vpop.permute.xlu0 %31
    %vm33 = vcmp.eq.s32.totalorder %v29, %v32
    %v34 = vsel %vm33, 1, 0
    %v35 = vcvt.s32.f32 %v34
    %vm36 = vcmask 130048
    %v37 = vsel %vm36, %v23, -inf
    %38 = vmax.xlane.f32.xlu0 %v37
    %v39 = vpop.xlane.xlu0 %38
    %v40 = vsub.f32 %v23, %v39
    %v41 = vmul.f32 %v40, 1.442695
    %v42 = vpow.pop %v41
    %v43 = vsel %vm36, %v42, 0.0
    %44 = vadd.xlane.f32.xlu0 %v43
    %v45 = vpop.xlane.xlu0 %44
    %v46 = vlog2.pop %v45
    %v47 = vmul.f32 %v46, 0.6931472
    %v48 = vmul.f32 %v23, %v35
    %v49 = vsel %vm36, %v48, 0.0
    %50 = vadd.xlane.f32.xlu0 %v49
    %v51 = vpop.xlane.xlu0 %50
    %v52 = vsub.f32 %v51, %v39
    %v53 = vsub.f32 %v52, %v47
    %v54 = vmul.f32 %v53, 1.442695
    %v55 = vpow.pop %v54
    %v57 = vlaneseq
    %v58 = vshrl.u32 %v57, 7
    %v59 = vsub.s32 0, %v58
    %v60 = vrot.slane %v25, %v59
    %v62 = vmul.f32 %v60, %v35
    %v63 = vsel %vm36, %v62, 0.0
    %64 = vadd.xlane.f32.xlu0 %v63
    %v65 = vpop.xlane.xlu0 %64
    %v66 = vsub.f32 1.0, %v55
    %v67 = vmax.f32 %v66, 0.0
    %v68 = vmul.f32 %v67, %v67
    %v69 = vsub.f32 0.0, %v65
    %v70 = vmul.f32 %v69, %v68
    %v71 = vmul.f32 %v70, %v53
    %v72 = vsel %vm26, 1, 0
    %v73 = vcvt.s32.f32 %v72
    %s74 = sld [smem:[#allocation2]]
    %v75 = vmul.f32 %v71, %v73
    %vm76 = vcmask 7168
    %v77 = vsel %vm76, %v75, 0.0
    %78 = vadd.xlane.f32.xlu0 %v77
    %v79 = vpop.xlane.xlu0 %78
    %v80 = vrot.slane %v79, 4
    %v81 = vadd.f32 %v79, %v80
    %v82 = vrot.slane %v81, 2
    %v83 = vadd.f32 %v81, %v82
    %v84 = vrot.slane %v83, 1
    %v85 = vadd.f32 %v83, %v84
    %s86 = vtos %v85
    %s87 = sadd.f32 %s74, %s86
    %s88 = scalar_lea.smem [#allocation2], 0
    %89 = sst [smem:[%s88]] %s87
    %s90 = sld [smem:[#allocation2 + $0x1]]
    %v91 = vsel %vm76, %v73, 0.0
    %92 = vadd.xlane.f32.xlu0 %v91
    %v93 = vpop.xlane.xlu0 %92
    %v94 = vrot.slane %v93, 4
    %v95 = vadd.f32 %v93, %v94
    %v96 = vrot.slane %v95, 2
    %v97 = vadd.f32 %v95, %v96
    %v98 = vrot.slane %v97, 1
    %v99 = vadd.f32 %v97, %v98
    %s100 = vtos %v99
    %s101 = sadd.f32 %s90, %s100
    %s102 = scalar_lea.smem [#allocation2], 1
    %103 = sst [smem:[%s102]] %s101
    // Predicated region
    $region18: #{tpu_custom_call.1} parent=1 // pred_check
      %p104 = pneg %p15
    $region19: #{tpu_custom_call.1} parent=1 // pred_check_branch
      %106 = sbr.rel (%p104) target = $region21
    $region20: #{tpu_custom_call.1} parent=1 // pred_region
      %s107 = sld [smem:[#allocation2]]
      %s108 = sld [smem:[#allocation2 + $0x1]]
      %s109 = smax.f32 %s108, 1.0
      %v110 = vstv %s109
      %v111 = vrcp.pop %v110
      %s112 = vtos %v111
      %s113 = smul.f32 %s107, %s112
      %s114 = scalar_lea.smem [#allocation3], 0
      %115 = sst [smem:[%s114]] %s113
    $region21: #{tpu_custom_call.1} parent=1 // pred_fallthru
      _
    // Predicated region
    $region22: #{tpu_custom_call.1} parent=1 // pred_check
      _
    $region23: #{tpu_custom_call.1} parent=1 // pred_check_branch
      %117 = sbr.rel (0) target = $region25
    $region24: #{tpu_custom_call.1} parent=1 // pred_region
      %s119 = ssub.s32 16, 16
      %120 = vsyncadd [#allocation4], %s119
      %123 = dma.smem_to_hbm [#allocation3], 16, %s3, [#allocation4]
    $region25: #{tpu_custom_call.1} parent=1 // pred_fallthru
      _
    // Predicated region
    $region26: #{tpu_custom_call.1} parent=1 // pred_check
      _
    $region27: #{tpu_custom_call.1} parent=1 // pred_check_branch
      %125 = sbr.rel (0) target = $region29
    $region28: #{tpu_custom_call.1} parent=1 // pred_region
      %126 = dma.done [#allocation4], 16
    $region29: #{tpu_custom_call.1} parent=1 // pred_fallthru
      _
    %127 = sfence
    %128 = vsyncpa [#allocation4], 1

</llo_original>
